<compile_context>
chip_gen: v5e
topology: v5e:2x2
jax: 0.10.0
libtpu: 0.0.40
codegen_flags: <defaults>
</compile_context>

<pallas_src>
import functools
import numpy as np
import jax
import jax.numpy as jnp
from jax.experimental import pallas as pl
from jax.experimental.pallas import tpu as pltpu

# ------------------------- configuration (SAST_block(first_block=True)) ------------
DIM       = 32
DIM_HEAD  = 16
NUM_HEADS = DIM // DIM_HEAD
PART      = (4, 4)        # partition_size (h, w)
MLP_RATIO = 4
NORM_EPS  = 1e-5
LS_INIT   = 1e-5          # LayerScale init value (>0 -> LayerScale active)
AMP_VALUE = 0.0002
BOUNCE    = 0.001
ENABLE_CB = False         # TODO(synk): enable_CB context-broadcast branch not implemented (config default False)
WIN_BATCH = 128           # windows per attention grid step (review: 64-256)
VMEM_LIMIT = 32 * 1024 * 1024   # raise v5e's 16 MiB scoped default; safe on v6e/v7x
# drop_path = drop_mlp = 0.0  -> DropPath / dropout are identities (omitted)

# =================================== Pallas kernels ================================

def _layernorm_kernel(x_ref, g_ref, b_ref, o_ref, *, eps):
    x = x_ref[...]                                   # (RB, C)
    mu = jnp.mean(x, axis=-1, keepdims=True)
    xc = x - mu
    var = jnp.mean(xc * xc, axis=-1, keepdims=True)
    inv = jax.lax.rsqrt(var + eps)
    o_ref[...] = xc * inv * g_ref[...] + b_ref[...]


def layernorm_pallas(x2d, gamma, beta, eps=NORM_EPS, max_rb=4096):
    R, C = x2d.shape
    RB = R if R <= max_rb else max_rb
    return pl.pallas_call(
        functools.partial(_layernorm_kernel, eps=eps),
        out_shape=jax.ShapeDtypeStruct((R, C), x2d.dtype),
        grid=(pl.cdiv(R, RB),),
        in_specs=[pl.BlockSpec((RB, C), lambda i: (i, 0)),
                  pl.BlockSpec((1, C), lambda i: (0, 0)),
                  pl.BlockSpec((1, C), lambda i: (0, 0))],
        out_specs=pl.BlockSpec((RB, C), lambda i: (i, 0)),
        compiler_params=pltpu.CompilerParams(
            dimension_semantics=("parallel",), vmem_limit_bytes=VMEM_LIMIT),
    )(x2d, gamma.reshape(1, C), beta.reshape(1, C))


def _score_kernel(x_ref, sc_ref, sc2_ref, w_ref, b_ref, g_ref, bt_ref,
                  xw_ref, xn_ref, tn_ref, *, eps):
    # scores = relu(x @ Ws + bs) ; weight = sigmoid(scale)*sigmoid(scores)
    # xw = weight * x ; xn = norm1(xw) (fused layer-1 LayerNorm epilogue)
    # tn = sum_c |scale2 * scores|   (per-token L1 norm used by window/token selection)
    x = x_ref[0]                                     # (RB, C)
    s = jnp.dot(x, w_ref[...], preferred_element_type=jnp.float32) + b_ref[...]
    s = jnp.maximum(s, 0.0)
    wgt = jax.nn.sigmoid(sc_ref[0]) * jax.nn.sigmoid(s)     # (1,C)*(RB,C)
    xw = wgt * x
    xw_ref[0] = xw
    mu = jnp.mean(xw, axis=-1, keepdims=True)
    xc = xw - mu
    var = jnp.mean(xc * xc, axis=-1, keepdims=True)
    xn_ref[0] = xc * jax.lax.rsqrt(var + eps) * g_ref[...] + bt_ref[...]
    tn_ref[0] = jnp.sum(jnp.abs(sc2_ref[0] * s), axis=-1, keepdims=True)


def score_pallas(x3, scale, scale2, w, b, n1_g, n1_b, max_rb=2048):
    # x3: (B, R, C), scale/scale2: (B, 1, C)
    B, R, C = x3.shape
    RB = R if R <= max_rb else max_rb
    return pl.pallas_call(
        functools.partial(_score_kernel, eps=NORM_EPS),
        out_shape=(jax.ShapeDtypeStruct((B, R, C), jnp.float32),
                   jax.ShapeDtypeStruct((B, R, C), jnp.float32),
                   jax.ShapeDtypeStruct((B, R, 1), jnp.float32)),
        grid=(B, pl.cdiv(R, RB)),
        in_specs=[
            pl.BlockSpec((1, RB, C), lambda bb, t: (bb, t, 0)),
            pl.BlockSpec((1, 1, C), lambda bb, t: (bb, 0, 0)),
            pl.BlockSpec((1, 1, C), lambda bb, t: (bb, 0, 0)),
            pl.BlockSpec((C, C), lambda bb, t: (0, 0)),
            pl.BlockSpec((1, C), lambda bb, t: (0, 0)),
            pl.BlockSpec((1, C), lambda bb, t: (0, 0)),
            pl.BlockSpec((1, C), lambda bb, t: (0, 0)),
        ],
        out_specs=(pl.BlockSpec((1, RB, C), lambda bb, t: (bb, t, 0)),
                   pl.BlockSpec((1, RB, C), lambda bb, t: (bb, t, 0)),
                   pl.BlockSpec((1, RB, 1), lambda bb, t: (bb, t, 0))),
        compiler_params=pltpu.CompilerParams(
            dimension_semantics=("parallel", "parallel"),
            vmem_limit_bytes=VMEM_LIMIT),
    )(x3, scale, scale2, w, b, n1_g.reshape(1, C), n1_b.reshape(1, C))


def _attn_kernel(x_ref, bias_ref, wqkv_ref, bqkv_ref, wp_ref, bp_ref, o_ref,
                 *, num_heads, dim_head, scale):
    xb = x_ref[...]                                  # (WB, Lp, C)
    WB, Lp, C = xb.shape
    x2 = xb.reshape(WB * Lp, C)                      # leading-dim merge (Lp % 8 == 0 or full)
    # single fused QKV matmul: columns ordered [Q_h0..Q_hH | K_h0.. | V_h0..]
    qkv = jnp.dot(x2, wqkv_ref[...], preferred_element_type=jnp.float32) + bqkv_ref[...]
    bias = bias_ref[...]                             # (WB, 1, Lp) additive key-padding bias
    heads = []
    for h in range(num_heads):                       # unrolled (num_heads == 2)
        lo = h * dim_head
        q = qkv[:, lo:lo + dim_head].reshape(WB, Lp, dim_head)
        k = qkv[:, C + lo:C + lo + dim_head].reshape(WB, Lp, dim_head)
        v = qkv[:, 2 * C + lo:2 * C + lo + dim_head].reshape(WB, Lp, dim_head)
        a = jnp.einsum('bqd,bkd->bqk', q, k,
                       preferred_element_type=jnp.float32) * scale + bias
        a = a - jnp.max(a, axis=-1, keepdims=True)
        e = jnp.exp(a)
        p = e / jnp.sum(e, axis=-1, keepdims=True)   # exact softmax (no approx reciprocal)
        heads.append(jnp.einsum('bqk,bkd->bqd', p, v,
                                preferred_element_type=jnp.float32))
    ctx = jnp.concatenate(heads, axis=-1).reshape(WB * Lp, C)
    out = jnp.dot(ctx, wp_ref[...], preferred_element_type=jnp.float32) + bp_ref[...]
    o_ref[...] = out.reshape(WB, Lp, C)


def attention_pallas(x_sel, bias, p, num_heads, dim_head, wb):
    # x_sel: (Mp, Lp, C) already padded via host-built gather indices (no jnp.pad here)
    Mp, Lp, C = x_sel.shape
    scale = dim_head ** (-0.5)
    kern = functools.partial(_attn_kernel, num_heads=num_heads,
                             dim_head=dim_head, scale=scale)
    return pl.pallas_call(
        kern,
        out_shape=jax.ShapeDtypeStruct((Mp, Lp, C), jnp.float32),
        grid=(Mp // wb,),
        in_specs=[
            pl.BlockSpec((wb, Lp, C), lambda m: (m, 0, 0)),
            pl.BlockSpec((wb, 1, Lp), lambda m: (m, 0, 0)),
            pl.BlockSpec((C, 3 * C), lambda m: (0, 0)),
            pl.BlockSpec((1, 3 * C), lambda m: (0, 0)),
            pl.BlockSpec((C, C), lambda m: (0, 0)),
            pl.BlockSpec((1, C), lambda m: (0, 0)),
        ],
        out_specs=pl.BlockSpec((wb, Lp, C), lambda m: (m, 0, 0)),
        compiler_params=pltpu.CompilerParams(
            dimension_semantics=("parallel",), vmem_limit_bytes=VMEM_LIMIT),
    )(x_sel, bias, p['w_qkv'], p['b_qkv'], p['w_proj'], p['b_proj'])


def _tail_kernel(sc_ref, at_ref, ls1_ref, w1_ref, b1_ref, w2_ref, b2_ref, ls2_ref, o_ref):
    # x  = shortcut + ls1 * attn_out          (drop_path = identity)
    # y  = MLP(x)   = GELU(x@W1+b1)@W2+b2
    # out = x + ls2 * y
    x = sc_ref[...] + ls1_ref[...] * at_ref[...]
    h = jnp.dot(x, w1_ref[...], preferred_element_type=jnp.float32) + b1_ref[...]
    # TODO(synk): tanh-approx GELU (torch nn.GELU default is exact erf) -> tiny numeric drift
    h = 0.5 * h * (1.0 + jnp.tanh(0.7978845608028654 * (h + 0.044715 * h * h * h)))
    y = jnp.dot(h, w2_ref[...], preferred_element_type=jnp.float32) + b2_ref[...]
    o_ref[...] = x + ls2_ref[...] * y


def tail_pallas(shortcut, attn_out, p, max_rb=2048):
    R, C = shortcut.shape
    Ch = p['w1'].shape[1]
    RB = R if R <= max_rb else max_rb
    return pl.pallas_call(
        _tail_kernel,
        out_shape=jax.ShapeDtypeStruct((R, C), jnp.float32),
        grid=(pl.cdiv(R, RB),),
        in_specs=[pl.BlockSpec((RB, C), lambda i: (i, 0)),
                  pl.BlockSpec((RB, C), lambda i: (i, 0)),
                  pl.BlockSpec((1, C), lambda i: (0, 0)),
                  pl.BlockSpec((C, Ch), lambda i: (0, 0)),
                  pl.BlockSpec((1, Ch), lambda i: (0, 0)),
                  pl.BlockSpec((Ch, C), lambda i: (0, 0)),
                  pl.BlockSpec((1, C), lambda i: (0, 0)),
                  pl.BlockSpec((1, C), lambda i: (0, 0))],
        out_specs=pl.BlockSpec((RB, C), lambda i: (i, 0)),
        compiler_params=pltpu.CompilerParams(
            dimension_semantics=("parallel",), vmem_limit_bytes=VMEM_LIMIT),
    )(shortcut, attn_out, p['ls1'], p['w1'], p['b1'], p['w2'], p['b2'], p['ls2'])


# ========================= partition helpers (work on jnp and np arrays) ===========

def window_partition(x, ps):
    B, H, W, C = x.shape
    h, w = ps
    x = x.reshape(B, H // h, h, W // w, w, C).transpose(0, 1, 3, 2, 4, 5)
    return x.reshape(-1, h, w, C)


def window_reverse(windows, ps, img):
    H, W = img
    h, w = ps
    C = windows.shape[-1]
    x = windows.reshape(-1, H // h, W // w, h, w, C).transpose(0, 1, 3, 2, 4, 5)
    return x.reshape(-1, H, W, C)


def grid_partition(x, gs):
    B, H, W, C = x.shape
    g0, g1 = gs
    x = x.reshape(B, g0, H // g0, g1, W // g1, C).transpose(0, 2, 4, 1, 3, 5)
    return x.reshape(-1, g0, g1, C)


def grid_reverse(windows, gs, img):
    H, W = img
    g0, g1 = gs
    C = windows.shape[-1]
    x = windows.reshape(-1, H // g0, W // g1, g0, g1, C).transpose(0, 3, 1, 4, 2, 5)
    return x.reshape(-1, H, W, C)


# ======================= host-side sparse selection (NumPy) ========================
# Equivalent of window_selection + token_selection + get_score_index_* .
# Data-dependent shapes -> computed eagerly on the host from the small (B,N,hw) token-norm map.
# TODO(synk): could be moved on-device (jnp.top_k with a static bound) to remove the host sync.

def _softmax_np(x, axis=-1):
    x = x - x.max(axis=axis, keepdims=True)
    e = np.exp(x)
    return e / e.sum(axis=axis, keepdims=True)


def select_indices(token_norm, B, N, hw, bounce):
    # token_norm: (B, N, hw) = sum_c |scale2 * scores|
    norm_window = _softmax_np(token_norm.sum(axis=-1) / hw, axis=-1)          # (B, N)
    gt_w = norm_window >= (1.0 / N) / (1.0 + bounce)
    idx2d = np.argwhere(gt_w)
    index_window = (idx2d[:, 0] * N + idx2d[:, 1]).astype(np.int32)
    M = int(index_window.shape[0])
    if M == 0:
        z = np.zeros((0,), np.int32)
        return z, z, z, z, np.zeros((0,), np.int64)
    norm_token = _softmax_np(token_norm.reshape(B * N, hw)[index_window], axis=-1)
    gt_t = norm_token >= (1.0 / hw) / (1.0 + bounce)
    K = gt_t.sum(axis=1)
    Kmax = int(K.max())
    top_idx = np.argsort(-norm_token, axis=1)[:, :Kmax]                        # topk indices
    arange = (np.arange(M) * hw)[:, None]
    index_token = (top_idx + arange).reshape(-1).astype(np.int32)
    idx2d_t = np.argwhere(gt_t)
    asy_index = (idx2d_t[:, 0] * hw + idx2d_t[:, 1]).astype(np.int32)
    padding_index = np.setdiff1d(index_token, asy_index).astype(np.int32)      # isin(..., invert=True)
    return index_window, index_token, padding_index, asy_index, K


# ================================ MS_WSA forward ====================================

def ms_wsa_forward(x, index_window, index_token, padding_index, asy_index, M, p,
                   num_heads, dim_head, Xn=None, wb=WIN_BATCH):
    BN, L_full, C = x.shape
    if Xn is None:
        Xn = layernorm_pallas(x.reshape(-1, C), p['n1_g'], p['n1_b']).reshape(BN, L_full, C)
    if index_token.size == 0:
        return Xn
    iw_j = jnp.asarray(index_window)
    it_j = jnp.asarray(index_token)
    asy_j = jnp.asarray(asy_index)
    pad_j = jnp.asarray(padding_index)

    XX = Xn[iw_j].reshape(-1, C)                                  # (M*L_full, C)  (norm1'd)
    asy_norm2 = layernorm_pallas(XX[asy_j], p['n2_g'], p['n2_b'])
    x_mod = XX.at[asy_j].set(asy_norm2)                           # x[asy_index] = norm2(...)
    shortcut = asy_norm2

    # ----- host-built padded gather indices (no jnp.pad / slice copies around attention) ---
    L = index_token.shape[0] // M
    Lp = max(8, ((L + 7) // 8) * 8)                               # sublane-align token dim
    wb_eff = min(wb, max(1, M))
    Mp = ((M + wb_eff - 1) // wb_eff) * wb_eff
    it2d = np.zeros((Mp, Lp), np.int32)
    it2d[:M, :L] = np.asarray(index_token).reshape(M, L)
    is_pad = np.ones((Mp, Lp), np.float32)                        # 1.0 where key is padding
    is_pad[:M, :L] = (~np.isin(np.asarray(index_token).reshape(M, L),
                               np.asarray(asy_index))).astype(np.float32)
    bias = (-10000.0 * is_pad).reshape(Mp, 1, Lp)                 # additive key-padding bias

    x_sel = x_mod[jnp.asarray(it2d.reshape(-1))].reshape(Mp, Lp, C)
    attn_out = attention_pallas(x_sel, jnp.asarray(bias), p, num_heads, dim_head, wb_eff)
    attn_flat = attn_out.reshape(Mp * Lp, C)
    if (Mp, Lp) != (M, L):
        sel = (np.arange(M)[:, None] * Lp + np.arange(L)[None, :]).reshape(-1)
        attn_tok = attn_flat[jnp.asarray(sel.astype(np.int32))]
    else:
        attn_tok = attn_flat

    XX2 = XX.at[it_j].set(attn_tok)
    attn_asy = XX2[asy_j]
    out_asy = tail_pallas(shortcut, attn_asy, p)                  # residual + LS + MLP + residual
    XXf = XX2.at[asy_j].set(out_asy)
    XXf = XXf.at[pad_j].set(XX[pad_j])                            # restore norm1 at padding tokens
    Xout = Xn.at[iw_j].set(XXf.reshape(M, L_full, C))
    return Xout


# ============================== SAST_block forward ==================================

def sast_block_forward(x, pos_table, r, params,
                       partition_size=PART, dim_head=DIM_HEAD,
                       amp=AMP_VALUE, bounce=BOUNCE):
    B, H, W, C = x.shape
    h, w = partition_size
    N = (H * W) // (h * w)
    L_full = h * w
    nh = C // dim_head

    # pos_emb(x) modeled as a deterministic additive positional table (external module)
    x = x + pos_table
    xw = window_partition(x, partition_size).reshape(B, N, L_full, C)

    # ----- first_block scoring (fused Pallas kernel: gating + norm1 + token norms) --------
    scale = (r + 1e-6) @ jnp.exp(params['controls_w'])            # PositiveLinear, (B, C)
    scale2 = amp / scale
    scale2 = jnp.where(jnp.isinf(scale2), 0.0, scale2)
    x_weighted, x_norm1, token_norm = score_pallas(
        xw.reshape(B, N * L_full, C), scale[:, None, :], scale2[:, None, :],
        params['scores_w'], params['scores_b'],
        params['win']['n1_g'], params['win']['n1_b'])
    x_attn = x_weighted.reshape(B * N, L_full, C)
    xn1 = x_norm1.reshape(B * N, L_full, C)

    # ----- single (small) host sync: both layers' selections from the (B,N,hw) norm map ---
    tn_np = np.asarray(jax.device_get(token_norm)).reshape(B, N, L_full)
    iw1, it1, pad1, asy1, K1 = select_indices(tn_np, B, N, L_full, bounce)
    tn_sp = window_reverse(tn_np.reshape(B * N, h, w, 1), partition_size, (H, W))
    tn_g = grid_partition(tn_sp, partition_size).reshape(B, N, L_full)
    iw2, it2, pad2, asy2, K2 = select_indices(tn_g, B, N, L_full, bounce)

    # ----- first SAST layer (window attention; norm1 precomputed by the score kernel) -----
    M1 = int(iw1.shape[0])
    if it1.size:
        x_attn = ms_wsa_forward(x_attn, iw1, it1, pad1, asy1, M1, params['win'],
                                nh, dim_head, Xn=xn1)
    x_sp = window_reverse(x_attn, partition_size, (H, W))         # (B, H, W, C)
    index_count = int(asy1.size) // B

    # ----- second SAST layer (grid attention) -----
    M2 = int(iw2.shape[0])
    x_g = grid_partition(x_sp.reshape(B, H, W, C), partition_size).reshape(B * N, L_full, C)
    if it2.size:
        x_g = ms_wsa_forward(x_g, iw2, it2, pad2, asy2, M2, params['grid'], nh, dim_head)
    x_out = grid_reverse(x_g, partition_size, (H, W))
    index_count += int(asy2.size) // B

    index_list = [[iw1, it1, pad1, asy1, K1], [iw2, it2, pad2, asy2, K2]]
    return x_out, index_count, index_list


# ================================ parameter init ====================================

def prep_qkv_weights(wqkv, bqkv, num_heads, dim_head):
    """Convert torch-layout qkv weights ((C,3C) with out col j = h*3*dh + r*dh + d) to the
    kernel layout: columns ordered [Q_h0..Q_hH | K_h0.. | V_h0..] for one fused matmul."""
    C = wqkv.shape[0]
    w4 = wqkv.reshape(C, num_heads, 3, dim_head)
    w_re = jnp.transpose(w4, (0, 2, 1, 3)).reshape(C, 3 * C)
    b4 = bqkv.reshape(num_heads, 3, dim_head)
    b_re = jnp.transpose(b4, (1, 0, 2)).reshape(1, 3 * C)
    return w_re, b_re


def init_params(key):
    C = DIM
    hidden = MLP_RATIO * C

    def lin(k, i, o, s=0.05):
        kw, kb = jax.random.split(k)
        return (jax.random.normal(kw, (i, o), jnp.float32) * s,
                jax.random.normal(kb, (1, o), jnp.float32) * 0.01)

    def attn_params(k):
        k1, k2, k3, k4 = jax.random.split(k, 4)
        wqkv, bqkv = lin(k1, C, 3 * C)
        wproj, bproj = lin(k2, C, C)          # proj rows already head-major (h, d) -> matches ctx
        w1, b1 = lin(k3, C, hidden)
        w2, b2 = lin(k4, hidden, C)
        w_qkv, b_qkv = prep_qkv_weights(wqkv, bqkv, NUM_HEADS, DIM_HEAD)
        return dict(
            n1_g=jnp.ones((C,), jnp.float32), n1_b=jnp.zeros((C,), jnp.float32),
            n2_g=jnp.ones((C,), jnp.float32), n2_b=jnp.zeros((C,), jnp.float32),
            w_qkv=w_qkv, b_qkv=b_qkv, w_proj=wproj, b_proj=bproj,
            ls1=jnp.full((1, C), LS_INIT, jnp.float32),
            ls2=jnp.full((1, C), LS_INIT, jnp.float32),
            w1=w1, b1=b1, w2=w2, b2=b2)

    k0, k1, k2 = jax.random.split(key, 3)
    ws, bs = lin(k0, C, C)
    return dict(
        scores_w=ws, scores_b=bs,
        controls_w=jnp.ones((3, C), jnp.float32),   # PositiveLinear weight, constant init 1
        win=attn_params(k1),
        grid=attn_params(k2),
    )


# ===================================== main =========================================

if __name__ == "__main__":
    B, H, W = 2, 8, 8
    key = jax.random.PRNGKey(0)
    kx, kr, kp, kparams = jax.random.split(key, 4)

    x = jax.random.normal(kx, (B, H, W, DIM), jnp.float32)          # channels-last
    r = jax.random.uniform(kr, (B, 3), jnp.float32)                 # control signal for PositiveLinear
    pos_table = jax.random.normal(kp, (1, H, W, DIM), jnp.float32) * 0.1
    params = init_params(kparams)

    out, index_count, index_list = sast_block_forward(x, pos_table, r, params)
    out = jax.block_until_ready(out)
    assert out.shape == (B, H, W, DIM)
    assert jnp.all(jnp.isfinite(out))
    print("KERNEL_OK")
</pallas_src>

<mosaic_0001>
module attributes {stable_mosaic.version = 11 : i64} {
  func.func @_score_kernel(%arg0: i32, %arg1: i32, %arg2: memref<1x64x32xf32, #tpu.memory_space<vmem>>, %arg3: memref<1x1x32xf32, #tpu.memory_space<vmem>>, %arg4: memref<1x1x32xf32, #tpu.memory_space<vmem>>, %arg5: memref<32x32xf32, #tpu.memory_space<vmem>>, %arg6: memref<1x32xf32, #tpu.memory_space<vmem>>, %arg7: memref<1x32xf32, #tpu.memory_space<vmem>>, %arg8: memref<1x32xf32, #tpu.memory_space<vmem>>, %arg9: memref<1x64x32xf32, #tpu.memory_space<vmem>>, %arg10: memref<1x64x32xf32, #tpu.memory_space<vmem>>, %arg11: memref<1x64x1xf32, #tpu.memory_space<vmem>>) attributes {dimension_semantics = [#tpu.dimension_semantics<parallel>, #tpu.dimension_semantics<parallel>], iteration_bounds = array<i64: 2, 1>, scalar_prefetch = 0 : i64, scratch_operands = 0 : i64, tpu.core_type = #tpu.core_type<tc>, window_params = [{transform_indices = @transform_0, window_bounds = array<i64: 1, 64, 32>}, {transform_indices = @transform_1, window_bounds = array<i64: 1, 1, 32>}, {transform_indices = @transform_2, window_bounds = array<i64: 1, 1, 32>}, {pipeline_mode = #tpu.pipeline_mode<synchronous>, transform_indices = @transform_3, window_bounds = array<i64: 32, 32>}, {pipeline_mode = #tpu.pipeline_mode<synchronous>, transform_indices = @transform_4, window_bounds = array<i64: 1, 32>}, {pipeline_mode = #tpu.pipeline_mode<synchronous>, transform_indices = @transform_5, window_bounds = array<i64: 1, 32>}, {pipeline_mode = #tpu.pipeline_mode<synchronous>, transform_indices = @transform_6, window_bounds = array<i64: 1, 32>}, {transform_indices = @transform_7, window_bounds = array<i64: 1, 64, 32>}, {transform_indices = @transform_8, window_bounds = array<i64: 1, 64, 32>}, {transform_indices = @transform_9, window_bounds = array<i64: 1, 64, 1>}]} {
    %c0 = arith.constant 0 : index
    %c0_0 = arith.constant 0 : index
    %c0_1 = arith.constant 0 : index
    %0 = vector.load %arg2[%c0, %c0_0, %c0_1] : memref<1x64x32xf32, #tpu.memory_space<vmem>>, vector<1x64x32xf32>
    %1 = vector.shape_cast %0 : vector<1x64x32xf32> to vector<64x32xf32>
    %c0_2 = arith.constant 0 : index
    %c0_3 = arith.constant 0 : index
    %2 = vector.load %arg5[%c0_2, %c0_3] : memref<32x32xf32, #tpu.memory_space<vmem>>, vector<32x32xf32>
    %cst = arith.constant dense<0.000000e+00> : vector<64x32xf32>
    %3 = tpu.matmul %1, %2, %cst {dimension_numbers = #tpu.dot_dimension_numbers<[1], [0], [0], [1], [0, 0, 1, 1], [], []>} : vector<64x32xf32>, vector<32x32xf32>, vector<64x32xf32> -> vector<64x32xf32>
    %c0_4 = arith.constant 0 : index
    %c0_5 = arith.constant 0 : index
    %4 = vector.load %arg6[%c0_4, %c0_5] : memref<1x32xf32, #tpu.memory_space<vmem>>, vector<1x32xf32>
    %5 = vector.broadcast %4 : vector<1x32xf32> to vector<64x32xf32>
    %6 = arith.addf %3, %5 : vector<64x32xf32>
    %cst_6 = arith.constant 0.000000e+00 : f32
    %7 = vector.broadcast %cst_6 : f32 to vector<64x32xf32>
    %8 = arith.maximumf %6, %7 : vector<64x32xf32>
    %c0_7 = arith.constant 0 : index
    %c0_8 = arith.constant 0 : index
    %c0_9 = arith.constant 0 : index
    %9 = vector.load %arg3[%c0_7, %c0_8, %c0_9] : memref<1x1x32xf32, #tpu.memory_space<vmem>>, vector<1x1x32xf32>
    %10 = vector.shape_cast %9 : vector<1x1x32xf32> to vector<1x32xf32>
    %11 = arith.negf %10 : vector<1x32xf32>
    %12 = math.exp %11 : vector<1x32xf32>
    %cst_10 = arith.constant 1.000000e+00 : f32
    %13 = vector.broadcast %cst_10 : f32 to vector<1x32xf32>
    %14 = arith.addf %13, %12 : vector<1x32xf32>
    %15 = arith.divf %13, %14 : vector<1x32xf32>
    %16 = arith.negf %8 : vector<64x32xf32>
    %17 = math.exp %16 : vector<64x32xf32>
    %cst_11 = arith.constant 1.000000e+00 : f32
    %18 = vector.broadcast %cst_11 : f32 to vector<64x32xf32>
    %19 = arith.addf %18, %17 : vector<64x32xf32>
    %20 = arith.divf %18, %19 : vector<64x32xf32>
    %21 = vector.broadcast %15 : vector<1x32xf32> to vector<64x32xf32>
    %22 = arith.mulf %21, %20 : vector<64x32xf32>
    %23 = arith.mulf %22, %1 : vector<64x32xf32>
    %c0_12 = arith.constant 0 : index
    %c0_13 = arith.constant 0 : index
    %c0_14 = arith.constant 0 : index
    %24 = vector.load %arg9[%c0_12, %c0_13, %c0_14] : memref<1x64x32xf32, #tpu.memory_space<vmem>>, vector<1x64x32xf32>
    %25 = vector.shape_cast %24 : vector<1x64x32xf32> to vector<64x32xf32>
    %26 = vector.shape_cast %23 : vector<64x32xf32> to vector<1x64x32xf32>
    tpu.vector_store %arg9[%c0_12, %c0_13, %c0_14], %26 {strides = array<i32>} : memref<1x64x32xf32, #tpu.memory_space<vmem>>, vector<1x64x32xf32>,
    %cst_15 = arith.constant dense<0.000000e+00> : vector<64xf32>
    %27 = vector.multi_reduction <add>, %23, %cst_15 [1] : vector<64x32xf32> to vector<64xf32>
    %28 = vector.shape_cast %27 : vector<64xf32> to vector<64x1xf32>
    %cst_16 = arith.constant 3.200000e+01 : f32
    %29 = vector.broadcast %cst_16 : f32 to vector<64x1xf32>
    %30 = arith.divf %28, %29 : vector<64x1xf32>
    %31 = vector.broadcast %30 : vector<64x1xf32> to vector<64x32xf32>
    %32 = arith.subf %23, %31 : vector<64x32xf32>
    %33 = arith.mulf %32, %32 : vector<64x32xf32>
    %cst_17 = arith.constant dense<0.000000e+00> : vector<64xf32>
    %34 = vector.multi_reduction <add>, %33, %cst_17 [1] : vector<64x32xf32> to vector<64xf32>
    %35 = vector.shape_cast %34 : vector<64xf32> to vector<64x1xf32>
    %cst_18 = arith.constant 3.200000e+01 : f32
    %36 = vector.broadcast %cst_18 : f32 to vector<64x1xf32>
    %37 = arith.divf %35, %36 : vector<64x1xf32>
    %cst_19 = arith.constant 9.99999974E-6 : f32
    %38 = vector.broadcast %cst_19 : f32 to vector<64x1xf32>
    %39 = arith.addf %37, %38 : vector<64x1xf32>
    %40 = math.rsqrt %39 : vector<64x1xf32>
    %41 = vector.broadcast %40 : vector<64x1xf32> to vector<64x32xf32>
    %42 = arith.mulf %32, %41 : vector<64x32xf32>
    %c0_20 = arith.constant 0 : index
    %c0_21 = arith.constant 0 : index
    %43 = vector.load %arg7[%c0_20, %c0_21] : memref<1x32xf32, #tpu.memory_space<vmem>>, vector<1x32xf32>
    %44 = vector.broadcast %43 : vector<1x32xf32> to vector<64x32xf32>
    %45 = arith.mulf %42, %44 : vector<64x32xf32>
    %c0_22 = arith.constant 0 : index
    %c0_23 = arith.constant 0 : index
    %46 = vector.load %arg8[%c0_22, %c0_23] : memref<1x32xf32, #tpu.memory_space<vmem>>, vector<1x32xf32>
    %47 = vector.broadcast %46 : vector<1x32xf32> to vector<64x32xf32>
    %48 = arith.addf %45, %47 : vector<64x32xf32>
    %c0_24 = arith.constant 0 : index
    %c0_25 = arith.constant 0 : index
    %c0_26 = arith.constant 0 : index
    %49 = vector.load %arg10[%c0_24, %c0_25, %c0_26] : memref<1x64x32xf32, #tpu.memory_space<vmem>>, vector<1x64x32xf32>
    %50 = vector.shape_cast %49 : vector<1x64x32xf32> to vector<64x32xf32>
    %51 = vector.shape_cast %48 : vector<64x32xf32> to vector<1x64x32xf32>
    tpu.vector_store %arg10[%c0_24, %c0_25, %c0_26], %51 {strides = array<i32>} : memref<1x64x32xf32, #tpu.memory_space<vmem>>, vector<1x64x32xf32>,
    %c0_27 = arith.constant 0 : index
    %c0_28 = arith.constant 0 : index
    %c0_29 = arith.constant 0 : index
    %52 = vector.load %arg4[%c0_27, %c0_28, %c0_29] : memref<1x1x32xf32, #tpu.memory_space<vmem>>, vector<1x1x32xf32>
    %53 = vector.shape_cast %52 : vector<1x1x32xf32> to vector<1x32xf32>
    %54 = vector.broadcast %53 : vector<1x32xf32> to vector<64x32xf32>
    %55 = arith.mulf %54, %8 : vector<64x32xf32>
    %56 = math.absf %55 : vector<64x32xf32>
    %cst_30 = arith.constant dense<0.000000e+00> : vector<64xf32>
    %57 = vector.multi_reduction <add>, %56, %cst_30 [1] : vector<64x32xf32> to vector<64xf32>
    %58 = vector.shape_cast %57 : vector<64xf32> to vector<64x1xf32>
    %c0_31 = arith.constant 0 : index
    %c0_32 = arith.constant 0 : index
    %c0_33 = arith.constant 0 : index
    %59 = vector.load %arg11[%c0_31, %c0_32, %c0_33] : memref<1x64x1xf32, #tpu.memory_space<vmem>>, vector<1x64x1xf32>
    %60 = vector.shape_cast %59 : vector<1x64x1xf32> to vector<64x1xf32>
    %61 = vector.shape_cast %58 : vector<64x1xf32> to vector<1x64x1xf32>
    tpu.vector_store %arg11[%c0_31, %c0_32, %c0_33], %61 {strides = array<i32>} : memref<1x64x1xf32, #tpu.memory_space<vmem>>, vector<1x64x1xf32>,
    return
  }
  func.func @transform_0(%arg0: i32, %arg1: i32) -> (i32, i32, i32) {
    %c0_i32 = arith.constant 0 : i32
    %c0_i32_0 = arith.constant 0 : i32
    return %arg0, %arg1, %c0_i32 : i32, i32, i32
  }
  func.func @transform_1(%arg0: i32, %arg1: i32) -> (i32, i32, i32) {
    %c0_i32 = arith.constant 0 : i32
    %c0_i32_0 = arith.constant 0 : i32
    %c0_i32_1 = arith.constant 0 : i32
    return %arg0, %c0_i32, %c0_i32_0 : i32, i32, i32
  }
  func.func @transform_2(%arg0: i32, %arg1: i32) -> (i32, i32, i32) {
    %c0_i32 = arith.constant 0 : i32
    %c0_i32_0 = arith.constant 0 : i32
    %c0_i32_1 = arith.constant 0 : i32
    return %arg0, %c0_i32, %c0_i32_0 : i32, i32, i32
  }
  func.func @transform_3(%arg0: i32, %arg1: i32) -> (i32, i32) {
    %c0_i32 = arith.constant 0 : i32
    %c0_i32_0 = arith.constant 0 : i32
    %c0_i32_1 = arith.constant 0 : i32
    return %c0_i32, %c0_i32_0 : i32, i32
  }
  func.func @transform_4(%arg0: i32, %arg1: i32) -> (i32, i32) {
    %c0_i32 = arith.constant 0 : i32
    %c0_i32_0 = arith.constant 0 : i32
    %c0_i32_1 = arith.constant 0 : i32
    return %c0_i32, %c0_i32_0 : i32, i32
  }
  func.func @transform_5(%arg0: i32, %arg1: i32) -> (i32, i32) {
    %c0_i32 = arith.constant 0 : i32
    %c0_i32_0 = arith.constant 0 : i32
    %c0_i32_1 = arith.constant 0 : i32
    return %c0_i32, %c0_i32_0 : i32, i32
  }
  func.func @transform_6(%arg0: i32, %arg1: i32) -> (i32, i32) {
    %c0_i32 = arith.constant 0 : i32
    %c0_i32_0 = arith.constant 0 : i32
    %c0_i32_1 = arith.constant 0 : i32
    return %c0_i32, %c0_i32_0 : i32, i32
  }
  func.func @transform_7(%arg0: i32, %arg1: i32) -> (i32, i32, i32) {
    %c0_i32 = arith.constant 0 : i32
    %c0_i32_0 = arith.constant 0 : i32
    return %arg0, %arg1, %c0_i32 : i32, i32, i32
  }
  func.func @transform_8(%arg0: i32, %arg1: i32) -> (i32, i32, i32) {
    %c0_i32 = arith.constant 0 : i32
    %c0_i32_0 = arith.constant 0 : i32
    return %arg0, %arg1, %c0_i32 : i32, i32, i32
  }
  func.func @transform_9(%arg0: i32, %arg1: i32) -> (i32, i32, i32) {
    %c0_i32 = arith.constant 0 : i32
    %c0_i32_0 = arith.constant 0 : i32
    return %arg0, %arg1, %c0_i32 : i32, i32, i32
  }
}

</mosaic_0001>

<llo_original>
// kernel: tpu_custom_call.1
$region0: #{tpu_custom_call.1}
  #allocation0 [shape = 'u32[]', space=smem, size = 0x4, offset = 0x4, fixed_abs, tag = 'smem constant byte address 0x4 - core index']
  #allocation1 [shape = 'u32[72,128]{1,0:T(1,128)}', space=vmem, size = 0x9000, scoped, tag = 'internal scratch']
  %s0 = inlined_call_operand.vmem [shape: f32[2,64,32], index: 0, kind: input, shape index: {}]
  %s1 = inlined_call_operand.vmem [shape: f32[2,1,32], index: 1, kind: input, shape index: {}]
  %s2 = inlined_call_operand.vmem [shape: f32[2,1,32], index: 2, kind: input, shape index: {}]
  %s3 = inlined_call_operand.vmem [shape: f32[32,32], index: 3, kind: input, shape index: {}]
  %s4 = inlined_call_operand.vmem [shape: f32[1,32], index: 4, kind: input, shape index: {}]
  %s5 = inlined_call_operand.vmem [shape: f32[1,32], index: 5, kind: input, shape index: {}]
  %s6 = inlined_call_operand.vmem [shape: f32[1,32], index: 6, kind: input, shape index: {}]
  %s7 = inlined_call_operand.vmem [shape: f32[2,64,32], index: 7, kind: output, shape index: {0}]
  %s8 = inlined_call_operand.vmem [shape: f32[2,64,32], index: 8, kind: output, shape index: {1}]
  %s9 = inlined_call_operand.vmem [shape: f32[2,64,1], index: 9, kind: output, shape index: {2}]
  %10 = xla_tuple %s7, %s8, %s9
  %s11 = sld [smem:[#allocation0]]
  $region77: #{tpu_custom_call.1} parent=0
    _
  %s13 = ssub.s32 1, %s11
  %s14 = scalar_select 0, %s13, %s11
  loop: start=0, step=1, limit=4
  $region2: #{tpu_custom_call.1} parent=0 // loop_pre_header
    _
  $region3: #{tpu_custom_call.1} parent=0 // loop_header
    %s16 = sphi 0, %s20
    %p17 = scmp.ge.s32.totalorder %s16, 4
    %s23 = sphi 0, %s35
    %s24 = sphi 0, %s31
    %s25 = sphi 0, %s23
    %s26 = sphi 0, %s24
    %s27 = sphi 0, %s25
    %s28 = sphi 0, %s26
    %s40 = sphi 0, %s42
    %s43 = sphi 0, %s40
    %s44 = sphi 0, %s43
    %s60 = sphi 0, %s44
    %s66 = sphi 0, %s68
    %s69 = sphi 0, %s66
    %s70 = sphi 0, %s69
    %s86 = sphi 0, %s70
    %s92 = sphi 0, %s94
    %s95 = sphi 0, %s92
    %s96 = sphi 0, %s95
    %s112 = sphi 0, %s96
    %s116 = sphi 0, %s116
    %s118 = sphi 0, %s116
    %s119 = sphi 0, %s118
    %s133 = sphi 0, %s119
    %s137 = sphi 0, %s137
    %s139 = sphi 0, %s137
    %s140 = sphi 0, %s139
    %s154 = sphi 0, %s140
    %s158 = sphi 0, %s158
    %s160 = sphi 0, %s158
    %s161 = sphi 0, %s160
    %s175 = sphi 0, %s161
    %s179 = sphi 0, %s179
    %s181 = sphi 0, %s179
    %s182 = sphi 0, %s181
    %s196 = sphi 0, %s182
    %s204 = sphi 0, %s206
    %s207 = sphi 0, %s204
    %s208 = sphi 0, %s207
    %s224 = sphi 0, %s208
    %s232 = sphi 0, %s234
    %s235 = sphi 0, %s232
    %s236 = sphi 0, %s235
    %s252 = sphi 0, %s236
    %s260 = sphi 0, %s262
    %s263 = sphi 0, %s260
    %s264 = sphi 0, %s263
    %s280 = sphi 0, %s264
  $region4: #{tpu_custom_call.1} parent=0 // loop_header_branch
    %19 = sbr.rel (%p17) target = $region8
  $region5: #{tpu_custom_call.1} parent=0 // loop_body
    %s21 = ssub.s32 %s16, 1
    %s22 = ssub.s32 %s16, 2
    %s29 = sadd.s32 1, %s24
    %p30 = scmp.ge.s32.totalorder %s29, 1
    %s31 = scalar_select %p30, 0, %s29
    %s32 = sadd.s32 1, %s23
    %s33 = scalar_select %p30, %s32, %s23
    %p34 = scmp.ge.s32.totalorder %s33, 2
    %s35 = scalar_select %p34, 0, %s33
    %s36 = ssub.s32 %s23, %s35
    %s37 = ssub.s32 %s24, %s31
    %s38 = sor.u32 %s36, %s37
    %p39 = scmp.eq.s32.totalorder %s38, 0
    %s41 = sadd.s32 %s40, 1
    %s42 = scalar_select %p39, %s40, %s41
    %p45 = pneg %p39
    %p46 = scmp.eq.s32.totalorder %s16, 1
    %p47 = por %p45, %p46
    %p48 = scmp.ne.s32.totalorder %s40, %s43
    %p49 = scmp.eq.s32.totalorder %s16, 0
    %p50 = por %p48, %p49
    %p51 = scmp.ne.s32.totalorder %s40, %s43
    %p52 = scmp.eq.s32.totalorder %s21, 1
    %p53 = por %p51, %p52
    %p54 = scmp.ne.s32.totalorder %s43, %s44
    %p55 = scmp.eq.s32.totalorder %s21, 0
    %p56 = por %p54, %p55
    %p57 = scmp.ne.s32.totalorder %s43, %s44
    %p58 = scmp.eq.s32.totalorder %s22, 1
    %p59 = por %p57, %p58
    %p61 = scmp.ne.s32.totalorder %s44, %s60
    %p62 = scmp.eq.s32.totalorder %s22, 0
    %p63 = por %p61, %p62
    %s64 = ssub.s32 %s23, %s35
    %p65 = scmp.eq.s32.totalorder %s64, 0
    %s67 = sadd.s32 %s66, 1
    %s68 = scalar_select %p65, %s66, %s67
    %p71 = pneg %p65
    %p72 = scmp.eq.s32.totalorder %s16, 1
    %p73 = por %p71, %p72
    %p74 = scmp.ne.s32.totalorder %s66, %s69
    %p75 = scmp.eq.s32.totalorder %s16, 0
    %p76 = por %p74, %p75
    %p77 = scmp.ne.s32.totalorder %s66, %s69
    %p78 = scmp.eq.s32.totalorder %s21, 1
    %p79 = por %p77, %p78
    %p80 = scmp.ne.s32.totalorder %s69, %s70
    %p81 = scmp.eq.s32.totalorder %s21, 0
    %p82 = por %p80, %p81
    %p83 = scmp.ne.s32.totalorder %s69, %s70
    %p84 = scmp.eq.s32.totalorder %s22, 1
    %p85 = por %p83, %p84
    %p87 = scmp.ne.s32.totalorder %s70, %s86
    %p88 = scmp.eq.s32.totalorder %s22, 0
    %p89 = por %p87, %p88
    %s90 = ssub.s32 %s23, %s35
    %p91 = scmp.eq.s32.totalorder %s90, 0
    %s93 = sadd.s32 %s92, 1
    %s94 = scalar_select %p91, %s92, %s93
    %p97 = pneg %p91
    %p98 = scmp.eq.s32.totalorder %s16, 1
    %p99 = por %p97, %p98
    %p100 = scmp.ne.s32.totalorder %s92, %s95
    %p101 = scmp.eq.s32.totalorder %s16, 0
    %p102 = por %p100, %p101
    %p103 = scmp.ne.s32.totalorder %s92, %s95
    %p104 = scmp.eq.s32.totalorder %s21, 1
    %p105 = por %p103, %p104
    %p106 = scmp.ne.s32.totalorder %s95, %s96
    %p107 = scmp.eq.s32.totalorder %s21, 0
    %p108 = por %p106, %p107
    %p109 = scmp.ne.s32.totalorder %s95, %s96
    %p110 = scmp.eq.s32.totalorder %s22, 1
    %p111 = por %p109, %p110
    %p113 = scmp.ne.s32.totalorder %s96, %s112
    %p114 = scmp.eq.s32.totalorder %s22, 0
    %p115 = por %p113, %p114
    %s117 = sadd.s32 %s116, 1
    %p120 = scmp.eq.s32.totalorder %s16, 1
    %p121 = scmp.ne.s32.totalorder %s116, %s118
    %p122 = scmp.eq.s32.totalorder %s16, 0
    %p123 = por %p121, %p122
    %p124 = scmp.ne.s32.totalorder %s116, %s118
    %p125 = scmp.eq.s32.totalorder %s21, 1
    %p126 = por %p124, %p125
    %p127 = scmp.ne.s32.totalorder %s118, %s119
    %p128 = scmp.eq.s32.totalorder %s21, 0
    %p129 = por %p127, %p128
    %p130 = scmp.ne.s32.totalorder %s118, %s119
    %p131 = scmp.eq.s32.totalorder %s22, 1
    %p132 = por %p130, %p131
    %p134 = scmp.ne.s32.totalorder %s119, %s133
    %p135 = scmp.eq.s32.totalorder %s22, 0
    %p136 = por %p134, %p135
    %s138 = sadd.s32 %s137, 1
    %p141 = scmp.eq.s32.totalorder %s16, 1
    %p142 = scmp.ne.s32.totalorder %s137, %s139
    %p143 = scmp.eq.s32.totalorder %s16, 0
    %p144 = por %p142, %p143
    %p145 = scmp.ne.s32.totalorder %s137, %s139
    %p146 = scmp.eq.s32.totalorder %s21, 1
    %p147 = por %p145, %p146
    %p148 = scmp.ne.s32.totalorder %s139, %s140
    %p149 = scmp.eq.s32.totalorder %s21, 0
    %p150 = por %p148, %p149
    %p151 = scmp.ne.s32.totalorder %s139, %s140
    %p152 = scmp.eq.s32.totalorder %s22, 1
    %p153 = por %p151, %p152
    %p155 = scmp.ne.s32.totalorder %s140, %s154
    %p156 = scmp.eq.s32.totalorder %s22, 0
    %p157 = por %p155, %p156
    %s159 = sadd.s32 %s158, 1
    %p162 = scmp.eq.s32.totalorder %s16, 1
    %p163 = scmp.ne.s32.totalorder %s158, %s160
    %p164 = scmp.eq.s32.totalorder %s16, 0
    %p165 = por %p163, %p164
    %p166 = scmp.ne.s32.totalorder %s158, %s160
    %p167 = scmp.eq.s32.totalorder %s21, 1
    %p168 = por %p166, %p167
    %p169 = scmp.ne.s32.totalorder %s160, %s161
    %p170 = scmp.eq.s32.totalorder %s21, 0
    %p171 = por %p169, %p170
    %p172 = scmp.ne.s32.totalorder %s160, %s161
    %p173 = scmp.eq.s32.totalorder %s22, 1
    %p174 = por %p172, %p173
    %p176 = scmp.ne.s32.totalorder %s161, %s175
    %p177 = scmp.eq.s32.totalorder %s22, 0
    %p178 = por %p176, %p177
    %s180 = sadd.s32 %s179, 1
    %p183 = scmp.eq.s32.totalorder %s16, 1
    %p184 = scmp.ne.s32.totalorder %s179, %s181
    %p185 = scmp.eq.s32.totalorder %s16, 0
    %p186 = por %p184, %p185
    %p187 = scmp.ne.s32.totalorder %s179, %s181
    %p188 = scmp.eq.s32.totalorder %s21, 1
    %p189 = por %p187, %p188
    %p190 = scmp.ne.s32.totalorder %s181, %s182
    %p191 = scmp.eq.s32.totalorder %s21, 0
    %p192 = por %p190, %p191
    %p193 = scmp.ne.s32.totalorder %s181, %s182
    %p194 = scmp.eq.s32.totalorder %s22, 1
    %p195 = por %p193, %p194
    %p197 = scmp.ne.s32.totalorder %s182, %s196
    %p198 = scmp.eq.s32.totalorder %s22, 0
    %p199 = por %p197, %p198
    %s200 = ssub.s32 %s23, %s35
    %s201 = ssub.s32 %s24, %s31
    %s202 = sor.u32 %s200, %s201
    %p203 = scmp.eq.s32.totalorder %s202, 0
    %s205 = sadd.s32 %s204, 1
    %s206 = scalar_select %p203, %s204, %s205
    %p209 = pneg %p203
    %p210 = scmp.eq.s32.totalorder %s16, 1
    %p211 = por %p209, %p210
    %p212 = scmp.ne.s32.totalorder %s204, %s207
    %p213 = scmp.eq.s32.totalorder %s16, 0
    %p214 = por %p212, %p213
    %p215 = scmp.ne.s32.totalorder %s204, %s207
    %p216 = scmp.eq.s32.totalorder %s21, 1
    %p217 = por %p215, %p216
    %p218 = scmp.ne.s32.totalorder %s207, %s208
    %p219 = scmp.eq.s32.totalorder %s21, 0
    %p220 = por %p218, %p219
    %p221 = scmp.ne.s32.totalorder %s207, %s208
    %p222 = scmp.eq.s32.totalorder %s22, 1
    %p223 = por %p221, %p222
    %p225 = scmp.ne.s32.totalorder %s208, %s224
    %p226 = scmp.eq.s32.totalorder %s22, 0
    %p227 = por %p225, %p226
    %s228 = ssub.s32 %s23, %s35
    %s229 = ssub.s32 %s24, %s31
    %s230 = sor.u32 %s228, %s229
    %p231 = scmp.eq.s32.totalorder %s230, 0
    %s233 = sadd.s32 %s232, 1
    %s234 = scalar_select %p231, %s232, %s233
    %p237 = pneg %p231
    %p238 = scmp.eq.s32.totalorder %s16, 1
    %p239 = por %p237, %p238
    %p240 = scmp.ne.s32.totalorder %s232, %s235
    %p241 = scmp.eq.s32.totalorder %s16, 0
    %p242 = por %p240, %p241
    %p243 = scmp.ne.s32.totalorder %s232, %s235
    %p244 = scmp.eq.s32.totalorder %s21, 1
    %p245 = por %p243, %p244
    %p246 = scmp.ne.s32.totalorder %s235, %s236
    %p247 = scmp.eq.s32.totalorder %s21, 0
    %p248 = por %p246, %p247
    %p249 = scmp.ne.s32.totalorder %s235, %s236
    %p250 = scmp.eq.s32.totalorder %s22, 1
    %p251 = por %p249, %p250
    %p253 = scmp.ne.s32.totalorder %s236, %s252
    %p254 = scmp.eq.s32.totalorder %s22, 0
    %p255 = por %p253, %p254
    %s256 = ssub.s32 %s23, %s35
    %s257 = ssub.s32 %s24, %s31
    %s258 = sor.u32 %s256, %s257
    %p259 = scmp.eq.s32.totalorder %s258, 0
    %s261 = sadd.s32 %s260, 1
    %s262 = scalar_select %p259, %s260, %s261
    %p265 = pneg %p259
    %p266 = scmp.eq.s32.totalorder %s16, 1
    %p267 = por %p265, %p266
    %p268 = scmp.ne.s32.totalorder %s260, %s263
    %p269 = scmp.eq.s32.totalorder %s16, 0
    %p270 = por %p268, %p269
    %p271 = scmp.ne.s32.totalorder %s260, %s263
    %p272 = scmp.eq.s32.totalorder %s21, 1
    %p273 = por %p271, %p272
    %p274 = scmp.ne.s32.totalorder %s263, %s264
    %p275 = scmp.eq.s32.totalorder %s21, 0
    %p276 = por %p274, %p275
    %p277 = scmp.ne.s32.totalorder %s263, %s264
    %p278 = scmp.eq.s32.totalorder %s22, 1
    %p279 = por %p277, %p278
    %p281 = scmp.ne.s32.totalorder %s264, %s280
    %p282 = scmp.eq.s32.totalorder %s22, 0
    %p283 = por %p281, %p282
    %p284 = scmp.le.s32.totalorder 1, %s16
    %p285 = scmp.lt.s32.totalorder %s16, 3
    %p286 = pnand %p284, %p285
    %p287 = pneg %p286
    // Predicated region
    $region9: #{tpu_custom_call.1} parent=5 // pred_check
      _
    $region10: #{tpu_custom_call.1} parent=5 // pred_check_branch
      %289 = sbr.rel (%p286) target = $region12
    $region11: #{tpu_custom_call.1} parent=5 // pred_region
      %s290 = ssub.s32 %s16, 1
      // Predicated region
      $region13: #{tpu_custom_call.1} parent=11 // pred_check
        %p291 = pneg %p129
      $region14: #{tpu_custom_call.1} parent=11 // pred_check_branch
        %293 = sbr.rel (%p291) target = $region16
      $region15: #{tpu_custom_call.1} parent=11 // pred_region
        _
      $region16: #{tpu_custom_call.1} parent=11 // pred_fallthru
        _
      // Predicated region
      $region17: #{tpu_custom_call.1} parent=11 // pred_check
        %p294 = pneg %p150
      $region18: #{tpu_custom_call.1} parent=11 // pred_check_branch
        %296 = sbr.rel (%p294) target = $region20
      $region19: #{tpu_custom_call.1} parent=11 // pred_region
        _
      $region20: #{tpu_custom_call.1} parent=11 // pred_fallthru
        _
      // Predicated region
      $region21: #{tpu_custom_call.1} parent=11 // pred_check
        %p297 = pneg %p171
      $region22: #{tpu_custom_call.1} parent=11 // pred_check_branch
        %299 = sbr.rel (%p297) target = $region24
      $region23: #{tpu_custom_call.1} parent=11 // pred_region
        _
      $region24: #{tpu_custom_call.1} parent=11 // pred_fallthru
        _
      // Predicated region
      $region25: #{tpu_custom_call.1} parent=11 // pred_check
        %p300 = pneg %p192
      $region26: #{tpu_custom_call.1} parent=11 // pred_check_branch
        %302 = sbr.rel (%p300) target = $region28
      $region27: #{tpu_custom_call.1} parent=11 // pred_region
        _
      $region28: #{tpu_custom_call.1} parent=11 // pred_fallthru
        _
    $region12: #{tpu_custom_call.1} parent=5 // pred_fallthru
      _
    %p303 = scmp.lt.s32.totalorder %s16, 2
    // Predicated region
    $region29: #{tpu_custom_call.1} parent=5 // pred_check
      %p304 = pneg %p303
    $region30: #{tpu_custom_call.1} parent=5 // pred_check_branch
      %306 = sbr.rel (%p304) target = $region32
    $region31: #{tpu_custom_call.1} parent=5 // pred_region
      // Predicated region
      $region33: #{tpu_custom_call.1} parent=31 // pred_check
        %p307 = pneg %p50
      $region34: #{tpu_custom_call.1} parent=31 // pred_check_branch
        %309 = sbr.rel (%p307) target = $region36
      $region35: #{tpu_custom_call.1} parent=31 // pred_region
        %s310 = smul.u32 8, %s24
        %p311 = scmp.lt.s32.totalorder %s23, 1
        %s312 = scalar_select %p311, %s23, 1
        %p313 = scmp.lt.s32.totalorder %s310, 7
        %s314 = scalar_select %p313, %s310, 7
        %s315 = smul.addr %s312, 8
        %s316 = sadd.s32 %s314, %s315
        %s317 = smul.addr %s316, 8
        %s318 = scalar_lea.vmem %s0, %s317
        %s319 = smul.u32 8, %s24
      $region36: #{tpu_custom_call.1} parent=31 // pred_fallthru
        _
      // Predicated region
      $region37: #{tpu_custom_call.1} parent=31 // pred_check
        %p320 = pneg %p76
      $region38: #{tpu_custom_call.1} parent=31 // pred_check_branch
        %322 = sbr.rel (%p320) target = $region40
      $region39: #{tpu_custom_call.1} parent=31 // pred_region
        %p323 = scmp.lt.s32.totalorder %s23, 1
        %s324 = scalar_select %p323, %s23, 1
        %s325 = scalar_lea.vmem %s1, %s324
      $region40: #{tpu_custom_call.1} parent=31 // pred_fallthru
        _
      // Predicated region
      $region41: #{tpu_custom_call.1} parent=31 // pred_check
        %p326 = pneg %p102
      $region42: #{tpu_custom_call.1} parent=31 // pred_check_branch
        %328 = sbr.rel (%p326) target = $region44
      $region43: #{tpu_custom_call.1} parent=31 // pred_region
        %p329 = scmp.lt.s32.totalorder %s23, 1
        %s330 = scalar_select %p329, %s23, 1
        %s331 = scalar_lea.vmem %s2, %s330
      $region44: #{tpu_custom_call.1} parent=31 // pred_fallthru
        _
    $region32: #{tpu_custom_call.1} parent=5 // pred_fallthru
      _
    %p332 = scmp.le.s32.totalorder 1, %s16
    %p333 = scmp.lt.s32.totalorder %s16, 3
    %p334 = pnand %p332, %p333
    %p335 = pneg %p334
    // Predicated region
    $region45: #{tpu_custom_call.1} parent=5 // pred_check
      _
    $region46: #{tpu_custom_call.1} parent=5 // pred_check_branch
      %337 = sbr.rel (%p334) target = $region48
    $region47: #{tpu_custom_call.1} parent=5 // pred_region
      %s338 = ssub.s32 %s16, 1
      %s339 = smul.u32 8, %s26
      %p340 = scmp.lt.s32.totalorder %s25, 1
      %s341 = scalar_select %p340, %s25, 1
      %p342 = scmp.lt.s32.totalorder %s339, 7
      %s343 = scalar_select %p342, %s339, 7
      %s344 = smul.addr %s341, 8
      %s345 = sadd.s32 %s343, %s344
      %s346 = smul.addr %s345, 8
      %s347 = scalar_lea.vmem %s0, %s346
      %p348 = pneg %p56
      %p349 = pneg %p53
      %p350 = scmp.lt.s32.totalorder %s25, 1
      %s351 = scalar_select %p350, %s25, 1
      %s352 = scalar_lea.vmem %s1, %s351
      %p353 = pneg %p82
      %p354 = pneg %p79
      %p355 = scmp.lt.s32.totalorder %s25, 1
      %s356 = scalar_select %p355, %s25, 1
      %s357 = scalar_lea.vmem %s2, %s356
      %p358 = pneg %p108
      %p359 = pneg %p105
      %p360 = pneg %p129
      %p361 = pneg %p126
      %p362 = pneg %p150
      %p363 = pneg %p147
      %p364 = pneg %p171
      %p365 = pneg %p168
      %p366 = pneg %p192
      %p367 = pneg %p189
      %p368 = pneg %p220
      %p369 = pneg %p217
      %s370 = smul.u32 8, %s26
      %p371 = scmp.lt.s32.totalorder %s25, 1
      %s372 = scalar_select %p371, %s25, 1
      %p373 = scmp.lt.s32.totalorder %s370, 7
      %s374 = scalar_select %p373, %s370, 7
      %s375 = smul.addr %s372, 8
      %s376 = sadd.s32 %s374, %s375
      %s377 = smul.addr %s376, 8
      %s378 = scalar_lea.vmem %s7, %s377
      %p379 = pneg %p248
      %p380 = pneg %p245
      %s381 = smul.u32 8, %s26
      %p382 = scmp.lt.s32.totalorder %s25, 1
      %s383 = scalar_select %p382, %s25, 1
      %p384 = scmp.lt.s32.totalorder %s381, 7
      %s385 = scalar_select %p384, %s381, 7
      %s386 = smul.addr %s383, 8
      %s387 = sadd.s32 %s385, %s386
      %s388 = smul.addr %s387, 8
      %s389 = scalar_lea.vmem %s8, %s388
      %p390 = pneg %p276
      %p391 = pneg %p273
      %s392 = smul.u32 8, %s26
      %p393 = scmp.lt.s32.totalorder %s25, 1
      %s394 = scalar_select %p393, %s25, 1
      %p395 = scmp.lt.s32.totalorder %s392, 7
      %s396 = scalar_select %p395, %s392, 7
      %s397 = smul.addr %s394, 8
      %s398 = sadd.s32 %s396, %s397
      %s399 = smul.addr %s398, 8
      %s400 = scalar_lea.vmem %s9, %s399
      %s401 = smul.u32 8, %s26
      %p402 = scmp.lt.s32.totalorder %s25, 1
      %s403 = scalar_select %p402, %s25, 1
      %p404 = scmp.lt.s32.totalorder %s401, 7
      %s405 = scalar_select %p404, %s401, 7
      %s406 = smul.addr %s403, 8
      %s407 = sadd.s32 %s405, %s406
      %s408 = smul.addr %s407, 8
      %s409 = scalar_lea.vmem %s0, %s408
      %s410 = smul.u32 8, %s26
      %p411 = scmp.lt.s32.totalorder %s25, 1
      %s412 = scalar_select %p411, %s25, 1
      %s413 = scalar_lea.vmem %s1, %s412
      %p414 = scmp.lt.s32.totalorder %s25, 1
      %s415 = scalar_select %p414, %s25, 1
      %s416 = scalar_lea.vmem %s2, %s415
      %s417 = smul.u32 8, %s26
      %p418 = scmp.lt.s32.totalorder %s25, 1
      %s419 = scalar_select %p418, %s25, 1
      %p420 = scmp.lt.s32.totalorder %s417, 7
      %s421 = scalar_select %p420, %s417, 7
      %s422 = smul.addr %s419, 8
      %s423 = sadd.s32 %s421, %s422
      %s424 = smul.addr %s423, 8
      %s425 = scalar_lea.vmem %s7, %s424
      %s426 = smul.u32 8, %s26
      %s427 = smul.u32 8, %s26
      %p428 = scmp.lt.s32.totalorder %s25, 1
      %s429 = scalar_select %p428, %s25, 1
      %p430 = scmp.lt.s32.totalorder %s427, 7
      %s431 = scalar_select %p430, %s427, 7
      %s432 = smul.addr %s429, 8
      %s433 = sadd.s32 %s431, %s432
      %s434 = smul.addr %s433, 8
      %s435 = scalar_lea.vmem %s8, %s434
      %s436 = smul.u32 8, %s26
      %s437 = smul.u32 8, %s26
      %p438 = scmp.lt.s32.totalorder %s25, 1
      %s439 = scalar_select %p438, %s25, 1
      %p440 = scmp.lt.s32.totalorder %s437, 7
      %s441 = scalar_select %p440, %s437, 7
      %s442 = smul.addr %s439, 8
      %s443 = sadd.s32 %s441, %s442
      %s444 = smul.addr %s443, 8
      %s445 = scalar_lea.vmem %s9, %s444
      %s446 = smul.u32 8, %s26
      %v447 = vld [vmem:[%s409] sm:$0xff]
      %v448 = vld [vmem:[%s409 + $0x8] sm:$0xff]
      %v449 = vld [vmem:[%s409 + $0x10] sm:$0xff]
      %v450 = vld [vmem:[%s409 + $0x18] sm:$0xff]
      %v451 = vld [vmem:[%s409 + $0x20] sm:$0xff]
      %v452 = vld [vmem:[%s409 + $0x28] sm:$0xff]
      %v453 = vld [vmem:[%s409 + $0x30] sm:$0xff]
      %v454 = vld [vmem:[%s409 + $0x38] sm:$0xff]
      %v455 = vld [vmem:[%s3] sm:$0xff]
      %v456 = vld [vmem:[%s3 + $0x8] sm:$0xff]
      %v457 = vld [vmem:[%s3 + $0x10] sm:$0xff]
      %v458 = vld [vmem:[%s3 + $0x18] sm:$0xff]
      %v459 = vld [vmem:[%s4] sm:$0x1]
      %v461 = vperm.slane %v459, 0
      %vm463 = vcmask 261120
      %v465 = vsel %vm463, %v447, 0
      %v468 = vsel %vm463, %v448, 0
      %v471 = vsel %vm463, %v449, 0
      %v474 = vsel %vm463, %v450, 0
      %v477 = vsel %vm463, %v451, 0
      %v480 = vsel %vm463, %v452, 0
      %v483 = vsel %vm463, %v453, 0
      %v486 = vsel %vm463, %v454, 0
      %488 = vmatpush.msra.mxu0 0.0
      %489 = vmatpush.msra.mxu0 0.0
      %490 = vmatpush.msra.mxu0 0.0
      %491 = vmatpush.msra.mxu0 0.0
      %492 = vmatpush.msra.mxu0 0.0
      %493 = vmatpush.msra.mxu0 0.0
      %494 = vmatpush.msra.mxu0 0.0
      %495 = vmatpush.msra.mxu0 0.0
      %496 = vmatpush.msra.mxu0 0.0
      %497 = vmatpush.msra.mxu0 0.0
      %498 = vmatpush.msra.mxu0 0.0
      %499 = vmatpush.msra.mxu0 0.0
      %500 = vmatpush.msra.mxu0 %v458
      %501 = vmatpush.msra.mxu0 %v457
      %502 = vmatpush.msra.mxu0 %v456
      %503 = vmatpush.msra.mxu0 %v455
      %504 = vmatmul.f32.gmra.mxu0 %v465
      %v505 = vpop.f32.mrf.mxu0
      %v506 = vadd.f32 %v461, %v505
      %507 = vmatmul.f32.gmra.mxu0 %v468
      %v508 = vpop.f32.mrf.mxu0
      %v509 = vadd.f32 %v461, %v508
      %510 = vmatmul.f32.gmra.mxu0 %v471
      %v511 = vpop.f32.mrf.mxu0
      %v512 = vadd.f32 %v461, %v511
      %513 = vmatmul.f32.gmra.mxu0 %v474
      %v514 = vpop.f32.mrf.mxu0
      %v515 = vadd.f32 %v461, %v514
      %516 = vmatmul.f32.gmra.mxu0 %v477
      %v517 = vpop.f32.mrf.mxu0
      %v518 = vadd.f32 %v461, %v517
      %519 = vmatmul.f32.gmra.mxu0 %v480
      %v520 = vpop.f32.mrf.mxu0
      %v521 = vadd.f32 %v461, %v520
      %522 = vmatmul.f32.gmra.mxu0 %v483
      %v523 = vpop.f32.mrf.mxu0
      %v524 = vadd.f32 %v461, %v523
      %525 = vmatmul.f32.gmra.mxu0 %v486
      %v526 = vpop.f32.mrf.mxu0
      %v527 = vadd.f32 %v461, %v526
      %528 = vdwg.mxu0
      %v529 = vmax.f32 %v506, 0.0
      %v530 = vmax.f32 %v509, 0.0
      %v531 = vmax.f32 %v512, 0.0
      %v532 = vmax.f32 %v515, 0.0
      %v533 = vmax.f32 %v518, 0.0
      %v534 = vmax.f32 %v521, 0.0
      %v535 = vmax.f32 %v524, 0.0
      %v536 = vmax.f32 %v527, 0.0
      %v537 = vld [vmem:[%s413] sm:$0x1]
      %v538 = vxor.u32 %v537, 2147483648
      %v539 = vmul.f32 %v538, 1.442695
      %v540 = vpow.pop %v539
      %v541 = vadd.f32 %v540, 1.0
      %v542 = vrcp.pop %v541
      %v543 = vmul.f32 %v541, %v542
      %v544 = vsub.f32 1.0, %v543
      %v545 = vmul.f32 %v542, %v544
      %v546 = vadd.f32 %v542, %v545
      %vm547 = vweird.f32 %v541
      %vm548 = vweird.f32 %v542
      %vm549 = vmor %vm547, %vm548
      %v550 = vsel %vm549, %v542, %v546
      %v551 = vand.u32 2147483647, %v541
      %vm552 = vcmp.eq.f32.partialorder %v551, 8.507059e+37
      %v553 = vand.u32 %v541, 2147483648
      %v554 = vor.u32 1.1754944e-38, %v553
      %v555 = vsel %vm552, %v554, %v550
      %v556 = vmul.f32 1.0, %v555
      %v557 = vxor.u32 %v529, 2147483648
      %v558 = vxor.u32 %v530, 2147483648
      %v559 = vxor.u32 %v531, 2147483648
      %v560 = vxor.u32 %v532, 2147483648
      %v561 = vxor.u32 %v533, 2147483648
      %v562 = vxor.u32 %v534, 2147483648
      %v563 = vxor.u32 %v535, 2147483648
      %v564 = vxor.u32 %v536, 2147483648
      %v565 = vmul.f32 %v557, 1.442695
      %v566 = vpow.pop %v565
      %v567 = vmul.f32 %v558, 1.442695
      %v568 = vpow.pop %v567
      %v569 = vmul.f32 %v559, 1.442695
      %v570 = vpow.pop %v569
      %v571 = vmul.f32 %v560, 1.442695
      %v572 = vpow.pop %v571
      %v573 = vmul.f32 %v561, 1.442695
      %v574 = vpow.pop %v573
      %v575 = vmul.f32 %v562, 1.442695
      %v576 = vpow.pop %v575
      %v577 = vmul.f32 %v563, 1.442695
      %v578 = vpow.pop %v577
      %v579 = vmul.f32 %v564, 1.442695
      %v580 = vpow.pop %v579
      %v581 = vadd.f32 %v566, 1.0
      %v582 = vadd.f32 %v568, 1.0
      %v583 = vadd.f32 %v570, 1.0
      %v584 = vadd.f32 %v572, 1.0
      %v585 = vadd.f32 %v574, 1.0
      %v586 = vadd.f32 %v576, 1.0
      %v587 = vadd.f32 %v578, 1.0
      %v588 = vadd.f32 %v580, 1.0
      %v589 = vrcp.pop %v581
      %v590 = vmul.f32 %v581, %v589
      %v591 = vsub.f32 1.0, %v590
      %v592 = vmul.f32 %v589, %v591
      %v593 = vadd.f32 %v589, %v592
      %vm594 = vweird.f32 %v581
      %vm595 = vweird.f32 %v589
      %vm596 = vmor %vm594, %vm595
      %v597 = vsel %vm596, %v589, %v593
      %v598 = vand.u32 2147483647, %v581
      %vm599 = vcmp.eq.f32.partialorder %v598, 8.507059e+37
      %v600 = vand.u32 %v581, 2147483648
      %v601 = vor.u32 1.1754944e-38, %v600
      %v602 = vsel %vm599, %v601, %v597
      %v603 = vmul.f32 1.0, %v602
      %v604 = vrcp.pop %v582
      %v605 = vmul.f32 %v582, %v604
      %v606 = vsub.f32 1.0, %v605
      %v607 = vmul.f32 %v604, %v606
      %v608 = vadd.f32 %v604, %v607
      %vm609 = vweird.f32 %v582
      %vm610 = vweird.f32 %v604
      %vm611 = vmor %vm609, %vm610
      %v612 = vsel %vm611, %v604, %v608
      %v613 = vand.u32 2147483647, %v582
      %vm614 = vcmp.eq.f32.partialorder %v613, 8.507059e+37
      %v615 = vand.u32 %v582, 2147483648
      %v616 = vor.u32 1.1754944e-38, %v615
      %v617 = vsel %vm614, %v616, %v612
      %v618 = vmul.f32 1.0, %v617
      %v619 = vrcp.pop %v583
      %v620 = vmul.f32 %v583, %v619
      %v621 = vsub.f32 1.0, %v620
      %v622 = vmul.f32 %v619, %v621
      %v623 = vadd.f32 %v619, %v622
      %vm624 = vweird.f32 %v583
      %vm625 = vweird.f32 %v619
      %vm626 = vmor %vm624, %vm625
      %v627 = vsel %vm626, %v619, %v623
      %v628 = vand.u32 2147483647, %v583
      %vm629 = vcmp.eq.f32.partialorder %v628, 8.507059e+37
      %v630 = vand.u32 %v583, 2147483648
      %v631 = vor.u32 1.1754944e-38, %v630
      %v632 = vsel %vm629, %v631, %v627
      %v633 = vmul.f32 1.0, %v632
      %v634 = vrcp.pop %v584
      %v635 = vmul.f32 %v584, %v634
      %v636 = vsub.f32 1.0, %v635
      %v637 = vmul.f32 %v634, %v636
      %v638 = vadd.f32 %v634, %v637
      %vm639 = vweird.f32 %v584
      %vm640 = vweird.f32 %v634
      %vm641 = vmor %vm639, %vm640
      %v642 = vsel %vm641, %v634, %v638
      %v643 = vand.u32 2147483647, %v584
      %vm644 = vcmp.eq.f32.partialorder %v643, 8.507059e+37
      %v645 = vand.u32 %v584, 2147483648
      %v646 = vor.u32 1.1754944e-38, %v645
      %v647 = vsel %vm644, %v646, %v642
      %v648 = vmul.f32 1.0, %v647
      %v649 = vrcp.pop %v585
      %v650 = vmul.f32 %v585, %v649
      %v651 = vsub.f32 1.0, %v650
      %v652 = vmul.f32 %v649, %v651
      %v653 = vadd.f32 %v649, %v652
      %vm654 = vweird.f32 %v585
      %vm655 = vweird.f32 %v649
      %vm656 = vmor %vm654, %vm655
      %v657 = vsel %vm656, %v649, %v653
      %v658 = vand.u32 2147483647, %v585
      %vm659 = vcmp.eq.f32.partialorder %v658, 8.507059e+37
      %v660 = vand.u32 %v585, 2147483648
      %v661 = vor.u32 1.1754944e-38, %v660
      %v662 = vsel %vm659, %v661, %v657
      %v663 = vmul.f32 1.0, %v662
      %v664 = vrcp.pop %v586
      %v665 = vmul.f32 %v586, %v664
      %v666 = vsub.f32 1.0, %v665
      %v667 = vmul.f32 %v664, %v666
      %v668 = vadd.f32 %v664, %v667
      %vm669 = vweird.f32 %v586
      %vm670 = vweird.f32 %v664
      %vm671 = vmor %vm669, %vm670
      %v672 = vsel %vm671, %v664, %v668
      %v673 = vand.u32 2147483647, %v586
      %vm674 = vcmp.eq.f32.partialorder %v673, 8.507059e+37
      %v675 = vand.u32 %v586, 2147483648
      %v676 = vor.u32 1.1754944e-38, %v675
      %v677 = vsel %vm674, %v676, %v672
      %v678 = vmul.f32 1.0, %v677
      %v679 = vrcp.pop %v587
      %v680 = vmul.f32 %v587, %v679
      %v681 = vsub.f32 1.0, %v680
      %v682 = vmul.f32 %v679, %v681
      %v683 = vadd.f32 %v679, %v682
      %vm684 = vweird.f32 %v587
      %vm685 = vweird.f32 %v679
      %vm686 = vmor %vm684, %vm685
      %v687 = vsel %vm686, %v679, %v683
      %v688 = vand.u32 2147483647, %v587
      %vm689 = vcmp.eq.f32.partialorder %v688, 8.507059e+37
      %v690 = vand.u32 %v587, 2147483648
      %v691 = vor.u32 1.1754944e-38, %v690
      %v692 = vsel %vm689, %v691, %v687
      %v693 = vmul.f32 1.0, %v692
      %v694 = vrcp.pop %v588
      %v695 = vmul.f32 %v588, %v694
      %v696 = vsub.f32 1.0, %v695
      %v697 = vmul.f32 %v694, %v696
      %v698 = vadd.f32 %v694, %v697
      %vm699 = vweird.f32 %v588
      %vm700 = vweird.f32 %v694
      %vm701 = vmor %vm699, %vm700
      %v702 = vsel %vm701, %v694, %v698
      %v703 = vand.u32 2147483647, %v588
      %vm704 = vcmp.eq.f32.partialorder %v703, 8.507059e+37
      %v705 = vand.u32 %v588, 2147483648
      %v706 = vor.u32 1.1754944e-38, %v705
      %v707 = vsel %vm704, %v706, %v702
      %v708 = vmul.f32 1.0, %v707
      %v710 = vperm.slane %v556, 0
      %v712 = vmul.f32 %v710, %v603
      %v713 = vmul.f32 %v710, %v618
      %v714 = vmul.f32 %v710, %v633
      %v715 = vmul.f32 %v710, %v648
      %v716 = vmul.f32 %v710, %v663
      %v717 = vmul.f32 %v710, %v678
      %v718 = vmul.f32 %v710, %v693
      %v719 = vmul.f32 %v710, %v708
      %v720 = vmul.f32 %v712, %v447
      %v721 = vmul.f32 %v713, %v448
      %v722 = vmul.f32 %v714, %v449
      %v723 = vmul.f32 %v715, %v450
      %v724 = vmul.f32 %v716, %v451
      %v725 = vmul.f32 %v717, %v452
      %v726 = vmul.f32 %v718, %v453
      %v727 = vmul.f32 %v719, %v454
      %728 = vst.msk [vmem:[%s425] sm:$0xff] %vm463, %v720
      %729 = vst.msk [vmem:[%s425 + $0x8] sm:$0xff] %vm463, %v721
      %730 = vst.msk [vmem:[%s425 + $0x10] sm:$0xff] %vm463, %v722
      %731 = vst.msk [vmem:[%s425 + $0x18] sm:$0xff] %vm463, %v723
      %732 = vst.msk [vmem:[%s425 + $0x20] sm:$0xff] %vm463, %v724
      %733 = vst.msk [vmem:[%s425 + $0x28] sm:$0xff] %vm463, %v725
      %734 = vst.msk [vmem:[%s425 + $0x30] sm:$0xff] %vm463, %v726
      %735 = vst.msk [vmem:[%s425 + $0x38] sm:$0xff] %vm463, %v727
      %v736 = vsel %vm463, %v720, 0.0
      %737 = vadd.xlane.f32.xlu0 %v736
      %v738 = vpop.xlane.xlu0 %737
      %v739 = vsel %vm463, %v721, 0.0
      %740 = vadd.xlane.f32.xlu0 %v739
      %v741 = vpop.xlane.xlu0 %740
      %v742 = vsel %vm463, %v722, 0.0
      %743 = vadd.xlane.f32.xlu0 %v742
      %v744 = vpop.xlane.xlu0 %743
      %v745 = vsel %vm463, %v723, 0.0
      %746 = vadd.xlane.f32.xlu0 %v745
      %v747 = vpop.xlane.xlu0 %746
      %v748 = vsel %vm463, %v724, 0.0
      %749 = vadd.xlane.f32.xlu0 %v748
      %v750 = vpop.xlane.xlu0 %749
      %v751 = vsel %vm463, %v725, 0.0
      %752 = vadd.xlane.f32.xlu0 %v751
      %v753 = vpop.xlane.xlu0 %752
      %v754 = vsel %vm463, %v726, 0.0
      %755 = vadd.xlane.f32.xlu0 %v754
      %v756 = vpop.xlane.xlu0 %755
      %v757 = vsel %vm463, %v727, 0.0
      %758 = vadd.xlane.f32.xlu0 %v757
      %v759 = vpop.xlane.xlu0 %758
      %v760 = vrcp.pop 32.0
      %v761 = vmul.f32 32.0, %v760
      %v762 = vsub.f32 1.0, %v761
      %v763 = vmul.f32 %v760, %v762
      %v764 = vadd.f32 %v760, %v763
      %vm765 = vweird.f32 %v760
      %v766 = vsel %vm765, %v760, %v764
      %v767 = vmul.f32 %v738, %v766
      %v768 = vmul.f32 %v741, %v766
      %v769 = vmul.f32 %v744, %v766
      %v770 = vmul.f32 %v747, %v766
      %v771 = vmul.f32 %v750, %v766
      %v772 = vmul.f32 %v753, %v766
      %v773 = vmul.f32 %v756, %v766
      %v774 = vmul.f32 %v759, %v766
      %v775 = vsub.f32 %v720, %v767
      %v776 = vsub.f32 %v721, %v768
      %v777 = vsub.f32 %v722, %v769
      %v778 = vsub.f32 %v723, %v770
      %v779 = vsub.f32 %v724, %v771
      %v780 = vsub.f32 %v725, %v772
      %v781 = vsub.f32 %v726, %v773
      %v782 = vsub.f32 %v727, %v774
      %v783 = vmul.f32 %v775, %v775
      %v784 = vmul.f32 %v776, %v776
      %v785 = vmul.f32 %v777, %v777
      %v786 = vmul.f32 %v778, %v778
      %v787 = vmul.f32 %v779, %v779
      %v788 = vmul.f32 %v780, %v780
      %v789 = vmul.f32 %v781, %v781
      %v790 = vmul.f32 %v782, %v782
      %v791 = vsel %vm463, %v783, 0.0
      %792 = vadd.xlane.f32.xlu0 %v791
      %v793 = vpop.xlane.xlu0 %792
      %v794 = vsel %vm463, %v784, 0.0
      %795 = vadd.xlane.f32.xlu0 %v794
      %v796 = vpop.xlane.xlu0 %795
      %v797 = vsel %vm463, %v785, 0.0
      %798 = vadd.xlane.f32.xlu0 %v797
      %v799 = vpop.xlane.xlu0 %798
      %v800 = vsel %vm463, %v786, 0.0
      %801 = vadd.xlane.f32.xlu0 %v800
      %v802 = vpop.xlane.xlu0 %801
      %v803 = vsel %vm463, %v787, 0.0
      %804 = vadd.xlane.f32.xlu0 %v803
      %v805 = vpop.xlane.xlu0 %804
      %v806 = vsel %vm463, %v788, 0.0
      %807 = vadd.xlane.f32.xlu0 %v806
      %v808 = vpop.xlane.xlu0 %807
      %v809 = vsel %vm463, %v789, 0.0
      %810 = vadd.xlane.f32.xlu0 %v809
      %v811 = vpop.xlane.xlu0 %810
      %v812 = vsel %vm463, %v790, 0.0
      %813 = vadd.xlane.f32.xlu0 %v812
      %v814 = vpop.xlane.xlu0 %813
      %v815 = vmul.f32 %v793, %v766
      %v816 = vmul.f32 %v796, %v766
      %v817 = vmul.f32 %v799, %v766
      %v818 = vmul.f32 %v802, %v766
      %v819 = vmul.f32 %v805, %v766
      %v820 = vmul.f32 %v808, %v766
      %v821 = vmul.f32 %v811, %v766
      %v822 = vmul.f32 %v814, %v766
      %v823 = vadd.f32 %v815, 1e-05
      %v824 = vadd.f32 %v816, 1e-05
      %v825 = vadd.f32 %v817, 1e-05
      %v826 = vadd.f32 %v818, 1e-05
      %v827 = vadd.f32 %v819, 1e-05
      %v828 = vadd.f32 %v820, 1e-05
      %v829 = vadd.f32 %v821, 1e-05
      %v830 = vadd.f32 %v822, 1e-05
      %v831 = vrsqrt.pop %v823
      %v832 = vmul.f32 %v831, %v823
      %v833 = vmul.f32 %v832, %v831
      %v834 = vmul.f32 0.5, %v833
      %v835 = vsub.f32 1.5, %v834
      %v836 = vmul.f32 %v831, %v835
      %vm837 = vweird.f32 %v823
      %vm838 = vweird.f32 %v831
      %vm839 = vmor %vm837, %vm838
      %v840 = vsel %vm839, %v831, %v836
      %v841 = vrsqrt.pop %v824
      %v842 = vmul.f32 %v841, %v824
      %v843 = vmul.f32 %v842, %v841
      %v844 = vmul.f32 0.5, %v843
      %v845 = vsub.f32 1.5, %v844
      %v846 = vmul.f32 %v841, %v845
      %vm847 = vweird.f32 %v824
      %vm848 = vweird.f32 %v841
      %vm849 = vmor %vm847, %vm848
      %v850 = vsel %vm849, %v841, %v846
      %v851 = vrsqrt.pop %v825
      %v852 = vmul.f32 %v851, %v825
      %v853 = vmul.f32 %v852, %v851
      %v854 = vmul.f32 0.5, %v853
      %v855 = vsub.f32 1.5, %v854
      %v856 = vmul.f32 %v851, %v855
      %vm857 = vweird.f32 %v825
      %vm858 = vweird.f32 %v851
      %vm859 = vmor %vm857, %vm858
      %v860 = vsel %vm859, %v851, %v856
      %v861 = vrsqrt.pop %v826
      %v862 = vmul.f32 %v861, %v826
      %v863 = vmul.f32 %v862, %v861
      %v864 = vmul.f32 0.5, %v863
      %v865 = vsub.f32 1.5, %v864
      %v866 = vmul.f32 %v861, %v865
      %vm867 = vweird.f32 %v826
      %vm868 = vweird.f32 %v861
      %vm869 = vmor %vm867, %vm868
      %v870 = vsel %vm869, %v861, %v866
      %v871 = vrsqrt.pop %v827
      %v872 = vmul.f32 %v871, %v827
      %v873 = vmul.f32 %v872, %v871
      %v874 = vmul.f32 0.5, %v873
      %v875 = vsub.f32 1.5, %v874
      %v876 = vmul.f32 %v871, %v875
      %vm877 = vweird.f32 %v827
      %vm878 = vweird.f32 %v871
      %vm879 = vmor %vm877, %vm878
      %v880 = vsel %vm879, %v871, %v876
      %v881 = vrsqrt.pop %v828
      %v882 = vmul.f32 %v881, %v828
      %v883 = vmul.f32 %v882, %v881
      %v884 = vmul.f32 0.5, %v883
      %v885 = vsub.f32 1.5, %v884
      %v886 = vmul.f32 %v881, %v885
      %vm887 = vweird.f32 %v828
      %vm888 = vweird.f32 %v881
      %vm889 = vmor %vm887, %vm888
      %v890 = vsel %vm889, %v881, %v886
      %v891 = vrsqrt.pop %v829
      %v892 = vmul.f32 %v891, %v829
      %v893 = vmul.f32 %v892, %v891
      %v894 = vmul.f32 0.5, %v893
      %v895 = vsub.f32 1.5, %v894
      %v896 = vmul.f32 %v891, %v895
      %vm897 = vweird.f32 %v829
      %vm898 = vweird.f32 %v891
      %vm899 = vmor %vm897, %vm898
      %v900 = vsel %vm899, %v891, %v896
      %v901 = vrsqrt.pop %v830
      %v902 = vmul.f32 %v901, %v830
      %v903 = vmul.f32 %v902, %v901
      %v904 = vmul.f32 0.5, %v903
      %v905 = vsub.f32 1.5, %v904
      %v906 = vmul.f32 %v901, %v905
      %vm907 = vweird.f32 %v830
      %vm908 = vweird.f32 %v901
      %vm909 = vmor %vm907, %vm908
      %v910 = vsel %vm909, %v901, %v906
      %v911 = vmul.f32 %v775, %v840
      %v912 = vmul.f32 %v776, %v850
      %v913 = vmul.f32 %v777, %v860
      %v914 = vmul.f32 %v778, %v870
      %v915 = vmul.f32 %v779, %v880
      %v916 = vmul.f32 %v780, %v890
      %v917 = vmul.f32 %v781, %v900
      %v918 = vmul.f32 %v782, %v910
      %v919 = vld [vmem:[%s5] sm:$0x1]
      %v921 = vperm.slane %v919, 0
      %v923 = vmul.f32 %v911, %v921
      %v924 = vmul.f32 %v912, %v921
      %v925 = vmul.f32 %v913, %v921
      %v926 = vmul.f32 %v914, %v921
      %v927 = vmul.f32 %v915, %v921
      %v928 = vmul.f32 %v916, %v921
      %v929 = vmul.f32 %v917, %v921
      %v930 = vmul.f32 %v918, %v921
      %v931 = vld [vmem:[%s6] sm:$0x1]
      %v933 = vperm.slane %v931, 0
      %v935 = vadd.f32 %v923, %v933
      %v936 = vadd.f32 %v924, %v933
      %v937 = vadd.f32 %v925, %v933
      %v938 = vadd.f32 %v926, %v933
      %v939 = vadd.f32 %v927, %v933
      %v940 = vadd.f32 %v928, %v933
      %v941 = vadd.f32 %v929, %v933
      %v942 = vadd.f32 %v930, %v933
      %943 = vst.msk [vmem:[%s435] sm:$0xff] %vm463, %v935
      %944 = vst.msk [vmem:[%s435 + $0x8] sm:$0xff] %vm463, %v936
      %945 = vst.msk [vmem:[%s435 + $0x10] sm:$0xff] %vm463, %v937
      %946 = vst.msk [vmem:[%s435 + $0x18] sm:$0xff] %vm463, %v938
      %947 = vst.msk [vmem:[%s435 + $0x20] sm:$0xff] %vm463, %v939
      %948 = vst.msk [vmem:[%s435 + $0x28] sm:$0xff] %vm463, %v940
      %949 = vst.msk [vmem:[%s435 + $0x30] sm:$0xff] %vm463, %v941
      %950 = vst.msk [vmem:[%s435 + $0x38] sm:$0xff] %vm463, %v942
      %v951 = vld [vmem:[%s416] sm:$0x1]
      %v953 = vperm.slane %v951, 0
      %v955 = vmul.f32 %v953, %v529
      %v956 = vmul.f32 %v953, %v530
      %v957 = vmul.f32 %v953, %v531
      %v958 = vmul.f32 %v953, %v532
      %v959 = vmul.f32 %v953, %v533
      %v960 = vmul.f32 %v953, %v534
      %v961 = vmul.f32 %v953, %v535
      %v962 = vmul.f32 %v953, %v536
      %v963 = vand.u32 2147483647, %v955
      %v964 = vand.u32 2147483647, %v956
      %v965 = vand.u32 2147483647, %v957
      %v966 = vand.u32 2147483647, %v958
      %v967 = vand.u32 2147483647, %v959
      %v968 = vand.u32 2147483647, %v960
      %v969 = vand.u32 2147483647, %v961
      %v970 = vand.u32 2147483647, %v962
      %v971 = vsel %vm463, %v963, 0.0
      %972 = vadd.xlane.f32.xlu0 %v971
      %v973 = vpop.xlane.xlu0 %972
      %v974 = vsel %vm463, %v964, 0.0
      %975 = vadd.xlane.f32.xlu0 %v974
      %v976 = vpop.xlane.xlu0 %975
      %v977 = vsel %vm463, %v965, 0.0
      %978 = vadd.xlane.f32.xlu0 %v977
      %v979 = vpop.xlane.xlu0 %978
      %v980 = vsel %vm463, %v966, 0.0
      %981 = vadd.xlane.f32.xlu0 %v980
      %v982 = vpop.xlane.xlu0 %981
      %v983 = vsel %vm463, %v967, 0.0
      %984 = vadd.xlane.f32.xlu0 %v983
      %v985 = vpop.xlane.xlu0 %984
      %v986 = vsel %vm463, %v968, 0.0
      %987 = vadd.xlane.f32.xlu0 %v986
      %v988 = vpop.xlane.xlu0 %987
      %v989 = vsel %vm463, %v969, 0.0
      %990 = vadd.xlane.f32.xlu0 %v989
      %v991 = vpop.xlane.xlu0 %990
      %v992 = vsel %vm463, %v970, 0.0
      %993 = vadd.xlane.f32.xlu0 %v992
      %v994 = vpop.xlane.xlu0 %993
      %vm995 = vcmask 7168
      %996 = vst.msk [vmem:[%s445] sm:$0xff] %vm995, %v973
      %997 = vst.msk [vmem:[%s445 + $0x8] sm:$0xff] %vm995, %v976
      %998 = vst.msk [vmem:[%s445 + $0x10] sm:$0xff] %vm995, %v979
      %999 = vst.msk [vmem:[%s445 + $0x18] sm:$0xff] %vm995, %v982
      %1000 = vst.msk [vmem:[%s445 + $0x20] sm:$0xff] %vm995, %v985
      %1001 = vst.msk [vmem:[%s445 + $0x28] sm:$0xff] %vm995, %v988
      %1002 = vst.msk [vmem:[%s445 + $0x30] sm:$0xff] %vm995, %v991
      %1003 = vst.msk [vmem:[%s445 + $0x38] sm:$0xff] %vm995, %v994
      %s1004 = smul.u32 8, %s26
      %p1005 = scmp.lt.s32.totalorder %s25, 1
      %s1006 = scalar_select %p1005, %s25, 1
      %p1007 = scmp.lt.s32.totalorder %s1004, 7
      %s1008 = scalar_select %p1007, %s1004, 7
      %s1009 = smul.addr %s1006, 8
      %s1010 = sadd.s32 %s1008, %s1009
      %s1011 = smul.addr %s1010, 8
      %s1012 = scalar_lea.vmem %s7, %s1011
      %s1013 = smul.u32 8, %s26
      %p1014 = scmp.lt.s32.totalorder %s25, 1
      %s1015 = scalar_select %p1014, %s25, 1
      %p1016 = scmp.lt.s32.totalorder %s1013, 7
      %s1017 = scalar_select %p1016, %s1013, 7
      %s1018 = smul.addr %s1015, 8
      %s1019 = sadd.s32 %s1017, %s1018
      %s1020 = smul.addr %s1019, 8
      %s1021 = scalar_lea.vmem %s8, %s1020
      %s1022 = smul.u32 8, %s26
      %p1023 = scmp.lt.s32.totalorder %s25, 1
      %s1024 = scalar_select %p1023, %s25, 1
      %p1025 = scmp.lt.s32.totalorder %s1022, 7
      %s1026 = scalar_select %p1025, %s1022, 7
      %s1027 = smul.addr %s1024, 8
      %s1028 = sadd.s32 %s1026, %s1027
      %s1029 = smul.addr %s1028, 8
      %s1030 = scalar_lea.vmem %s9, %s1029
      // Predicated region
      $region49: #{tpu_custom_call.1} parent=47 // pred_check
        %p1031 = pneg %p217
      $region50: #{tpu_custom_call.1} parent=47 // pred_check_branch
        %1033 = sbr.rel (%p1031) target = $region52
      $region51: #{tpu_custom_call.1} parent=47 // pred_region
        %s1034 = smul.u32 8, %s26
      $region52: #{tpu_custom_call.1} parent=47 // pred_fallthru
        _
      // Predicated region
      $region53: #{tpu_custom_call.1} parent=47 // pred_check
        %p1035 = pneg %p245
      $region54: #{tpu_custom_call.1} parent=47 // pred_check_branch
        %1037 = sbr.rel (%p1035) target = $region56
      $region55: #{tpu_custom_call.1} parent=47 // pred_region
        %s1038 = smul.u32 8, %s26
      $region56: #{tpu_custom_call.1} parent=47 // pred_fallthru
        _
      // Predicated region
      $region57: #{tpu_custom_call.1} parent=47 // pred_check
        %p1039 = pneg %p273
      $region58: #{tpu_custom_call.1} parent=47 // pred_check_branch
        %1041 = sbr.rel (%p1039) target = $region60
      $region59: #{tpu_custom_call.1} parent=47 // pred_region
        %s1042 = smul.u32 8, %s26
      $region60: #{tpu_custom_call.1} parent=47 // pred_fallthru
        _
    $region48: #{tpu_custom_call.1} parent=5 // pred_fallthru
      _
    %p1043 = scmp.le.s32.totalorder 2, %s16
    // Predicated region
    $region61: #{tpu_custom_call.1} parent=5 // pred_check
      %p1044 = pneg %p1043
    $region62: #{tpu_custom_call.1} parent=5 // pred_check_branch
      %1046 = sbr.rel (%p1044) target = $region64
    $region63: #{tpu_custom_call.1} parent=5 // pred_region
      %s1047 = ssub.s32 %s16, 2
      // Predicated region
      $region65: #{tpu_custom_call.1} parent=63 // pred_check
        %p1048 = pneg %p223
      $region66: #{tpu_custom_call.1} parent=63 // pred_check_branch
        %1050 = sbr.rel (%p1048) target = $region68
      $region67: #{tpu_custom_call.1} parent=63 // pred_region
        %s1051 = smul.u32 8, %s28
        %p1052 = scmp.lt.s32.totalorder %s27, 1
        %s1053 = scalar_select %p1052, %s27, 1
        %p1054 = scmp.lt.s32.totalorder %s1051, 7
        %s1055 = scalar_select %p1054, %s1051, 7
        %s1056 = smul.addr %s1053, 8
        %s1057 = sadd.s32 %s1055, %s1056
        %s1058 = smul.addr %s1057, 8
        %s1059 = scalar_lea.vmem %s7, %s1058
      $region68: #{tpu_custom_call.1} parent=63 // pred_fallthru
        _
      // Predicated region
      $region69: #{tpu_custom_call.1} parent=63 // pred_check
        %p1060 = pneg %p251
      $region70: #{tpu_custom_call.1} parent=63 // pred_check_branch
        %1062 = sbr.rel (%p1060) target = $region72
      $region71: #{tpu_custom_call.1} parent=63 // pred_region
        %s1063 = smul.u32 8, %s28
        %p1064 = scmp.lt.s32.totalorder %s27, 1
        %s1065 = scalar_select %p1064, %s27, 1
        %p1066 = scmp.lt.s32.totalorder %s1063, 7
        %s1067 = scalar_select %p1066, %s1063, 7
        %s1068 = smul.addr %s1065, 8
        %s1069 = sadd.s32 %s1067, %s1068
        %s1070 = smul.addr %s1069, 8
        %s1071 = scalar_lea.vmem %s8, %s1070
      $region72: #{tpu_custom_call.1} parent=63 // pred_fallthru
        _
      // Predicated region
      $region73: #{tpu_custom_call.1} parent=63 // pred_check
        %p1072 = pneg %p279
      $region74: #{tpu_custom_call.1} parent=63 // pred_check_branch
        %1074 = sbr.rel (%p1072) target = $region76
      $region75: #{tpu_custom_call.1} parent=63 // pred_region
        %s1075 = smul.u32 8, %s28
        %p1076 = scmp.lt.s32.totalorder %s27, 1
        %s1077 = scalar_select %p1076, %s27, 1
        %p1078 = scmp.lt.s32.totalorder %s1075, 7
        %s1079 = scalar_select %p1078, %s1075, 7
        %s1080 = smul.addr %s1077, 8
        %s1081 = sadd.s32 %s1079, %s1080
        %s1082 = smul.addr %s1081, 8
        %s1083 = scalar_lea.vmem %s9, %s1082
      $region76: #{tpu_custom_call.1} parent=63 // pred_fallthru
        _
    $region64: #{tpu_custom_call.1} parent=5 // pred_fallthru
      _
  $region6: #{tpu_custom_call.1} parent=0 // loop_footer
    %s20 = sadd.s32 1, %s16
  $region7: #{tpu_custom_call.1} parent=0 // loop_footer_branch
    %15 = sbr.rel target = $region3
  $region8: #{tpu_custom_call.1} parent=0 // loop_exit
    _

</llo_original>
